<compile_context>
chip_gen: v7x
topology: tpu7x:2x2x1
jax: 0.10.0
libtpu: 0.0.40
codegen_flags: <defaults>
</compile_context>

<pallas_src>
import functools

import jax
import jax.numpy as jnp
from jax.experimental import pallas as pl
from jax.experimental.pallas import tpu as pltpu


# --------------------------------------------------------------------------- #
# Small helpers
# --------------------------------------------------------------------------- #
def _vmem_capacity_bytes() -> int:
    """Physical VMEM of the local TPU (64 MiB v7x, 128 MiB v5e/v6e)."""
    try:
        return int(pltpu.get_tpu_info().vmem_capacity_bytes)
    except Exception:
        return 64 << 20  # conservative default (v7x)


def _vmem_budget_bytes() -> int:
    cap = _vmem_capacity_bytes()
    # More aggressive on 128 MiB chips, conservative on 64 MiB v7x.
    return cap // 2 if cap >= (100 << 20) else cap // 3


def _vmem_limit(needed: int) -> int:
    cap = _vmem_capacity_bytes()
    return int(min(0.9 * cap, max(needed + (8 << 20), 32 << 20)))


def _round_up(x: int, m: int) -> int:
    return (x + m - 1) // m * m


def _round_down(x: int, m: int) -> int:
    return (x // m) * m


# --------------------------------------------------------------------------- #
# Kernel bodies
# --------------------------------------------------------------------------- #
def _softmax_dim0_kernel(x_ref, o_ref, *, approx):
    """(N, tile_d) column slab; reduction over sublanes (torch dim=0)."""
    x = x_ref[...].astype(jnp.float32)
    e = jnp.exp(x - jnp.max(x, axis=0, keepdims=True))
    inv = pl.reciprocal(jnp.sum(e, axis=0, keepdims=True), approx=approx)
    # Padded lanes of a ragged last tile carry garbage; per-lane only, and the
    # padded lanes are discarded when this block is stored back to HBM.
    o_ref[...] = (e * inv).astype(o_ref.dtype)


def _colstats_kernel(x_ref, m_ref, l_ref, *, tile_n, n_rows, mask_rows):
    """Pass 1: per-column running max + rescaled sum-of-exp over row blocks."""
    i = pl.program_id(1)  # row-block index (reduction axis, innermost)

    @pl.when(i == 0)
    def _():
        m_ref[...] = jnp.full_like(m_ref, -jnp.inf)
        l_ref[...] = jnp.zeros_like(l_ref)

    x = x_ref[...].astype(jnp.float32)
    if mask_rows:  # ragged last row block: padded rows must not touch the stats
        row = i * tile_n + jax.lax.broadcasted_iota(jnp.int32, x.shape, 0)
        x = jnp.where(row < n_rows, x, -jnp.inf)

    m_prev = m_ref[...]
    m_new = jnp.maximum(m_prev, jnp.max(x, axis=0, keepdims=True))
    l_ref[...] = l_ref[...] * jnp.exp(m_prev - m_new) + jnp.sum(
        jnp.exp(x - m_new), axis=0, keepdims=True)
    m_ref[...] = m_new


def _normalize_kernel(x_ref, m_ref, l_ref, o_ref, *, approx):
    """Pass 2: elementwise exp(x - m) / l with broadcast (1, tile_d) or (1,1)."""
    x = x_ref[...].astype(jnp.float32)
    e = jnp.exp(x - m_ref[...])
    inv = pl.reciprocal(l_ref[...], approx=approx)
    o_ref[...] = (e * inv).astype(o_ref.dtype)


def _global_softmax_kernel(x_ref, o_ref, *, approx):
    """Single-block global softmax over a (8, W) slab (1-D input, padded -inf)."""
    x = x_ref[...].astype(jnp.float32)
    m = jnp.max(jnp.max(x, axis=1, keepdims=True), axis=0, keepdims=True)  # (1,1)
    e = jnp.exp(x - m)
    s = jnp.sum(jnp.sum(e, axis=1, keepdims=True), axis=0, keepdims=True)  # (1,1)
    o_ref[...] = (e * pl.reciprocal(s, approx=approx)).astype(o_ref.dtype)


# --------------------------------------------------------------------------- #
# Tile selection
# --------------------------------------------------------------------------- #
def _pick_tile_d_single(N, D, itemsize, budget):
    """Column-slab width for the single-pass path, or 0 if even a minimal slab
    does not fit the VMEM budget (caller falls back to the two-pass path)."""
    bytes_per_col = N * (4 * itemsize + 8)  # 2x in + 2x out (dbl-buffered) + f32 temps
    if D <= 128:
        return D if D * bytes_per_col <= budget else 0
    max_cols = _round_down(budget // bytes_per_col, 128)
    if max_cols < 128:
        return 0
    # Aim for ~8 MiB input blocks: big enough to amortise per-step overhead,
    # small enough to keep several pipeline stages in flight.
    target_cols = max(128, _round_down((8 << 20) // (N * itemsize), 128))
    tile_d = min(max_cols, target_cols, _round_up(D, 128))
    # Guarantee >= 2 column blocks when D allows it so both v7x TensorCores
    # stream independent slabs (no effect on single-TC v5e/v6e).
    if tile_d >= D and D >= 256:
        tile_d = max(128, _round_up(pl.cdiv(D, 2), 128))
    return tile_d


def _pick_tiles_two_pass(N, D, itemsize, budget):
    tile_d = D if D <= 128 else min(512, _round_up(D, 128))
    bytes_per_row = tile_d * (4 * itemsize + 8)  # pass-2 footprint dominates
    by_target = _round_down((4 << 20) // max(tile_d * itemsize, 1), 8)
    by_budget = _round_down(budget // max(bytes_per_row, 1), 8)
    tile_n = max(8, min(by_target, by_budget, _round_up(N, 8)))
    if N <= 8:
        tile_n = N
    return tile_n, tile_d


# --------------------------------------------------------------------------- #
# pallas_call wrappers
# --------------------------------------------------------------------------- #
def _softmax_dim0_single_pass(x, tile_d, approx):
    N, D = x.shape
    itemsize = jnp.dtype(x.dtype).itemsize
    needed = N * tile_d * (4 * itemsize + 8)
    return pl.pallas_call(
        functools.partial(_softmax_dim0_kernel, approx=approx),
        out_shape=jax.ShapeDtypeStruct((N, D), x.dtype),
        grid_spec=pltpu.PrefetchScalarGridSpec(
            num_scalar_prefetch=0,
            grid=(pl.cdiv(D, tile_d),),
            in_specs=[pl.BlockSpec((N, tile_d), lambda j: (0, j))],
            out_specs=pl.BlockSpec((N, tile_d), lambda j: (0, j)),
        ),
        compiler_params=pltpu.CompilerParams(
            dimension_semantics=("parallel",),
            vmem_limit_bytes=_vmem_limit(needed),
        ),
    )(x)


def _column_stats(x, tile_n, tile_d):
    N, D = x.shape
    itemsize = jnp.dtype(x.dtype).itemsize
    needed = tile_n * tile_d * (2 * itemsize + 8) + 32 * tile_d
    kernel = functools.partial(
        _colstats_kernel, tile_n=tile_n, n_rows=N, mask_rows=(N % tile_n) != 0)
    return pl.pallas_call(
        kernel,
        out_shape=(jax.ShapeDtypeStruct((1, D), jnp.float32),
                   jax.ShapeDtypeStruct((1, D), jnp.float32)),
        grid_spec=pltpu.PrefetchScalarGridSpec(
            num_scalar_prefetch=0,
            grid=(pl.cdiv(D, tile_d), pl.cdiv(N, tile_n)),  # reduction axis last
            in_specs=[pl.BlockSpec((tile_n, tile_d), lambda j, i: (i, j))],
            out_specs=[pl.BlockSpec((1, tile_d), lambda j, i: (0, j)),
                       pl.BlockSpec((1, tile_d), lambda j, i: (0, j))],
        ),
        compiler_params=pltpu.CompilerParams(
            dimension_semantics=("parallel", "arbitrary"),
            vmem_limit_bytes=_vmem_limit(needed),
        ),
    )(x)


def _normalize_2d(x, m, l, tile_n, tile_d, approx):
    N, D = x.shape
    itemsize = jnp.dtype(x.dtype).itemsize
    needed = tile_n * tile_d * (4 * itemsize + 8) + 64 * tile_d
    return pl.pallas_call(
        functools.partial(_normalize_kernel, approx=approx),
        out_shape=jax.ShapeDtypeStruct((N, D), x.dtype),
        grid_spec=pltpu.PrefetchScalarGridSpec(
            num_scalar_prefetch=0,
            grid=(pl.cdiv(D, tile_d), pl.cdiv(N, tile_n)),
            in_specs=[pl.BlockSpec((tile_n, tile_d), lambda j, i: (i, j)),
                      pl.BlockSpec((1, tile_d), lambda j, i: (0, j)),
                      pl.BlockSpec((1, tile_d), lambda j, i: (0, j))],
            out_specs=pl.BlockSpec((tile_n, tile_d), lambda j, i: (i, j)),
        ),
        compiler_params=pltpu.CompilerParams(
            dimension_semantics=("parallel", "parallel"),
            vmem_limit_bytes=_vmem_limit(needed),
        ),
    )(x, m, l)


def _softmax_global_1d(v, approx, force_two_pass, tile_d):
    """Softmax over all elements of a 1-D vector (== dim-0 of a column vector)."""
    n = v.shape[0]
    itemsize = jnp.dtype(v.dtype).itemsize
    n_pad = _round_up(max(n, 8), 8)
    w = n_pad // 8
    xp = jnp.pad(v, (0, n_pad - n), constant_values=float("-inf"))
    x2 = xp.reshape(8, w)  # sublane/lane-dense slab; -inf padding is inert
    budget = _vmem_budget_bytes()

    single_block_bytes = 8 * w * (4 * itemsize + 8)
    if (not force_two_pass) and single_block_bytes <= min(budget, 16 << 20):
        out = pl.pallas_call(
            functools.partial(_global_softmax_kernel, approx=approx),
            out_shape=jax.ShapeDtypeStruct((8, w), v.dtype),
            grid_spec=pltpu.PrefetchScalarGridSpec(
                num_scalar_prefetch=0,
                grid=(1,),
                in_specs=[pl.BlockSpec((8, w), lambda i: (0, 0))],
                out_specs=pl.BlockSpec((8, w), lambda i: (0, 0)),
            ),
            compiler_params=pltpu.CompilerParams(
                dimension_semantics=("arbitrary",),
                vmem_limit_bytes=_vmem_limit(single_block_bytes),
            ),
        )(x2)
        return out.reshape(n_pad)[:n]

    # Large (or forced) path: per-column stats of the (8, w) slab, combined to
    # global scalars in the wrapper (tiny), then a tiled elementwise normalise.
    if tile_d is None:
        if w <= 128:
            tile_d = w
        else:
            by_budget = max(128, _round_down(budget // (8 * (4 * itemsize + 8)), 128))
            target = max(128, _round_down((4 << 20) // (8 * itemsize), 128))
            tile_d = min(_round_up(w, 128), by_budget, target)
    m_col, l_col = _column_stats(x2, 8, tile_d)
    m_g = jnp.max(m_col)
    l_g = jnp.sum(l_col * jnp.exp(m_col - m_g))
    m_b = m_g.reshape(1, 1).astype(jnp.float32)
    l_b = l_g.reshape(1, 1).astype(jnp.float32)

    needed = 8 * tile_d * (4 * itemsize + 8)
    out = pl.pallas_call(
        functools.partial(_normalize_kernel, approx=approx),
        out_shape=jax.ShapeDtypeStruct((8, w), v.dtype),
        grid_spec=pltpu.PrefetchScalarGridSpec(
            num_scalar_prefetch=0,
            grid=(pl.cdiv(w, tile_d),),
            in_specs=[pl.BlockSpec((8, tile_d), lambda j: (0, j)),
                      pl.BlockSpec((1, 1), lambda j: (0, 0)),
                      pl.BlockSpec((1, 1), lambda j: (0, 0))],
            out_specs=pl.BlockSpec((8, tile_d), lambda j: (0, j)),
        ),
        compiler_params=pltpu.CompilerParams(
            dimension_semantics=("parallel",),
            vmem_limit_bytes=_vmem_limit(needed),
        ),
    )(x2, m_b, l_b)
    return out.reshape(n_pad)[:n]


@functools.partial(
    jax.jit, static_argnames=("approx", "force_two_pass", "tile_d", "tile_n"))
def softmax_stable(x, approx=False, force_two_pass=False, tile_d=None, tile_n=None):
    """Numerically-stable softmax over dim 0, matching torch SoftmaxStable.

    Accepts a 1-D array (softmax over its only axis) or a 2-D array
    (softmax over axis 0; columns independent).  Exact division by default.
    """
    orig_shape = x.shape

    if x.ndim == 1:
        return _softmax_global_1d(x, approx, force_two_pass, tile_d)
    if x.ndim == 2 and x.shape[1] == 1:
        out = _softmax_global_1d(x.reshape(-1), approx, force_two_pass, tile_d)
        return out.reshape(orig_shape)
    if x.ndim != 2:
        raise ValueError("softmax_stable expects a 1-D or 2-D input")

    N, D = x.shape
    itemsize = jnp.dtype(x.dtype).itemsize
    budget = _vmem_budget_bytes()

    if tile_d is not None and tile_d != D and tile_d % 128 != 0:
        raise ValueError("tile_d must be a multiple of 128 or equal to D")

    if not force_two_pass:
        auto_tile_d = _pick_tile_d_single(N, D, itemsize, budget)
        use_tile_d = tile_d if tile_d is not None else auto_tile_d
        if use_tile_d and N * use_tile_d * (4 * itemsize + 8) <= budget:
            return _softmax_dim0_single_pass(x, use_tile_d, approx)

    # Two-pass fallback: columns too tall for a VMEM-resident slab (or forced).
    tn, td = _pick_tiles_two_pass(N, D, itemsize, budget)
    if tile_n is not None:
        tn = tile_n
    if tile_d is not None:
        td = tile_d
    m, l = _column_stats(x, tn, td)
    return _normalize_2d(x, m, l, tn, td, approx)


# --------------------------------------------------------------------------- #
# Self-test
# --------------------------------------------------------------------------- #
if __name__ == "__main__":
    key = jax.random.PRNGKey(0)
    keys = jax.random.split(key, 8)

    # seq=8, hidden=32 — the module's natural small shape; softmax over rows.
    x0 = jax.random.normal(keys[0], (8, 32), dtype=jnp.float32)
    x1 = jax.random.normal(keys[1], (8, 512), dtype=jnp.float32)   # multi-block single-pass
    x2 = jax.random.normal(keys[2], (16, 200), dtype=jnp.float32)  # ragged last lane tile
    x3 = jax.random.normal(keys[3], (16, 300), dtype=jnp.float32)  # >=2-block split path
    x4 = jax.random.normal(keys[4], (37,), dtype=jnp.float32)      # 1-D global path
    x5 = jax.random.normal(keys[5], (20, 256), dtype=jnp.float32)  # two-pass 2-D (forced)
    x6 = jax.random.normal(keys[6], (1000,), dtype=jnp.float32)    # two-pass 1-D (forced)
    x7 = jax.random.normal(keys[7], (8, 32), dtype=jnp.bfloat16)   # bf16 store path

    def check(out, x, atol, rtol):
        ref = jax.nn.softmax(x.astype(jnp.float32), axis=0).astype(x.dtype)
        assert out.shape == x.shape and out.dtype == x.dtype
        assert jnp.allclose(out.astype(jnp.float32), ref.astype(jnp.float32),
                            atol=atol, rtol=rtol)

    # Exact-division default paths.
    check(jax.block_until_ready(softmax_stable(x0)), x0, 1e-6, 1e-6)
    check(jax.block_until_ready(softmax_stable(x1, tile_d=128)), x1, 1e-6, 1e-6)
    check(jax.block_until_ready(softmax_stable(x2)), x2, 1e-6, 1e-6)
    check(jax.block_until_ready(softmax_stable(x3)), x3, 1e-6, 1e-6)
    check(jax.block_until_ready(softmax_stable(x4)), x4, 1e-6, 1e-6)

    # Two-pass (online-rescaled) fallback paths, forced at small shapes so this
    # script validates them even though they only trigger for tall inputs.
    check(jax.block_until_ready(
        softmax_stable(x5, force_two_pass=True, tile_n=8, tile_d=128)), x5, 1e-5, 1e-5)
    check(jax.block_until_ready(softmax_stable(x6, force_two_pass=True)), x6, 1e-5, 1e-5)

    # bf16 storage with f32 accumulation, and the opt-in approx reciprocal.
    check(jax.block_until_ready(softmax_stable(x7)), x7, 2e-2, 2e-2)
    check(jax.block_until_ready(softmax_stable(x0, approx=True)), x0, 5e-3, 5e-3)

    # Columns sum to 1 with exact division.
    s = jnp.sum(jax.block_until_ready(softmax_stable(x1)), axis=0)
    assert jnp.allclose(s, jnp.ones_like(s), atol=1e-5)

    print("KERNEL_OK")
</pallas_src>

<mosaic_0001>
module attributes {stable_mosaic.version = 11 : i64} {
  func.func @_softmax_dim0_kernel(%arg0: i32, %arg1: memref<8x32xf32, #tpu.memory_space<vmem>>, %arg2: memref<8x32xf32, #tpu.memory_space<vmem>>) attributes {dimension_semantics = [#tpu.dimension_semantics<parallel>], iteration_bounds = array<i64: 1>, scalar_prefetch = 0 : i64, scratch_operands = 0 : i64, tpu.core_type = #tpu.core_type<tc>, window_params = [{transform_indices = @transform_0, window_bounds = array<i64: 8, 32>}, {transform_indices = @transform_1, window_bounds = array<i64: 8, 32>}]} {
    %c0 = arith.constant 0 : index
    %c0_0 = arith.constant 0 : index
    %0 = vector.load %arg1[%c0, %c0_0] : memref<8x32xf32, #tpu.memory_space<vmem>>, vector<8x32xf32>
    %cst = arith.constant dense<0xFF800000> : vector<32xf32>
    %1 = vector.multi_reduction <maximumf>, %0, %cst [0] : vector<8x32xf32> to vector<32xf32>
    %2 = vector.shape_cast %1 : vector<32xf32> to vector<1x32xf32>
    %3 = vector.broadcast %2 : vector<1x32xf32> to vector<8x32xf32>
    %4 = arith.subf %0, %3 : vector<8x32xf32>
    %5 = math.exp %4 : vector<8x32xf32>
    %cst_1 = arith.constant dense<0.000000e+00> : vector<32xf32>
    %6 = vector.multi_reduction <add>, %5, %cst_1 [0] : vector<8x32xf32> to vector<32xf32>
    %7 = vector.shape_cast %6 : vector<32xf32> to vector<1x32xf32>
    %8 = tpu.reciprocal %7 : vector<1x32xf32> -> vector<1x32xf32>
    %9 = vector.broadcast %8 : vector<1x32xf32> to vector<8x32xf32>
    %10 = arith.mulf %5, %9 : vector<8x32xf32>
    %c0_2 = arith.constant 0 : index
    %c0_3 = arith.constant 0 : index
    %11 = vector.load %arg2[%c0_2, %c0_3] : memref<8x32xf32, #tpu.memory_space<vmem>>, vector<8x32xf32>
    tpu.vector_store %arg2[%c0_2, %c0_3], %10 {strides = array<i32>} : memref<8x32xf32, #tpu.memory_space<vmem>>, vector<8x32xf32>,
    return
  }
  func.func @transform_0(%arg0: i32) -> (i32, i32) {
    %c0_i32 = arith.constant 0 : i32
    %c0_i32_0 = arith.constant 0 : i32
    return %c0_i32, %arg0 : i32, i32
  }
  func.func @transform_1(%arg0: i32) -> (i32, i32) {
    %c0_i32 = arith.constant 0 : i32
    %c0_i32_0 = arith.constant 0 : i32
    return %c0_i32, %arg0 : i32, i32
  }
}

</mosaic_0001>

<llo_original>
// kernel: softmax_stable.1
$region0: #{softmax_stable.1}
  #allocation0 [shape = 'u32[]', space=smem, size = 0x4, offset = 0x4, fixed_abs, tag = 'smem constant byte address 0x4 - core index']
  #allocation1 [shape = 'u32[144,128]{1,0:T(1,128)}', space=vmem, size = 0x12000, scoped, tag = 'internal scratch']
  %s0 = inlined_call_operand.hbm [shape: f32[8,32], index: 0, kind: input, shape index: {}]
  %s1 = inlined_call_operand.hbm [shape: f32[8,32], index: 1, kind: output, shape index: {}]
  %s2 = sld [smem:[#allocation0]]
  $region18: #{softmax_stable.1} parent=0
    _
  %s4 = ssub.s32 1, %s2
  %s5 = scalar_select 0, %s4, %s2
  $region1: #{softmax_stable.1} parent=0
    #allocation2 [shape = 'u8[4096]{0}', space=vmem, size = 0x1000, scoped, tag = 'input window, operand 0, single buffered']
    #allocation3 [shape = 's32[1]{0}', space=sflag, size = 0x4, scoped, tag = 'scoped memory for softmax_stable.1']
    #allocation4 [shape = 's32[1]{0}', space=sflag, size = 0x4, scoped, tag = 'scoped memory for softmax_stable.1']
    #allocation5 [shape = 'u8[4096]{0}', space=vmem, size = 0x1000, scoped, tag = 'output window, operand 0, single buffered']
    %6 = vsyncpa [#allocation3], 0
    %7 = vsyncpa [#allocation4], 0
    // Predicated region
    $region2: #{softmax_stable.1} parent=1 // pred_check
      _
    $region3: #{softmax_stable.1} parent=1 // pred_check_branch
      %9 = sbr.rel (0) target = $region5
    $region4: #{softmax_stable.1} parent=1 // pred_region
      %s11 = ssub.s32 128, 128
      %12 = vsyncadd [#allocation3], %s11
      %s14 = sshll.u32 [#allocation2], 4
      %s15 = int_to_ptr.vmem [resolvable:$true] %s14
      %17 = dma.hbm_to_vmem [thread:$0]  %s0, 128, %s15, [#allocation3]
    $region5: #{softmax_stable.1} parent=1 // pred_fallthru
      _
    // Predicated region
    $region6: #{softmax_stable.1} parent=1 // pred_check
      _
    $region7: #{softmax_stable.1} parent=1 // pred_check_branch
      %19 = sbr.rel (0) target = $region9
    $region8: #{softmax_stable.1} parent=1 // pred_region
      %20 = dma.done [#allocation3], 128
    $region9: #{softmax_stable.1} parent=1 // pred_fallthru
      _
    %v21 = vld [vmem:[#allocation2] sm:$0xff]
    %vm22 = vcmask 261120
    %v23 = vsel %vm22, %v21, -inf
    %v24 = vrot.slane %v23, 4
    %v25 = vmax.f32 %v23, %v24
    %v26 = vrot.slane %v25, 2
    %v27 = vmax.f32 %v25, %v26
    %v28 = vrot.slane %v27, 1
    %v29 = vmax.f32 %v27, %v28
    %v30 = vsub.f32 %v21, %v29
    %v31 = vmul.f32 %v30, 1.442695
    %v32 = vpow.pop %v31
    %v33 = vsel %vm22, %v32, 0.0
    %v34 = vrot.slane %v33, 4
    %v35 = vadd.f32 %v33, %v34
    %v36 = vrot.slane %v35, 2
    %v37 = vadd.f32 %v35, %v36
    %v38 = vrot.slane %v37, 1
    %v39 = vadd.f32 %v37, %v38
    %v40 = vrcp.pop %v39
    %v41 = vmul.f32 %v32, %v40
    %42 = vst.msk [vmem:[#allocation5] sm:$0xff] %vm22, %v41
    // Predicated region
    $region10: #{softmax_stable.1} parent=1 // pred_check
      _
    $region11: #{softmax_stable.1} parent=1 // pred_check_branch
      %44 = sbr.rel (0) target = $region13
    $region12: #{softmax_stable.1} parent=1 // pred_region
      %s46 = ssub.s32 128, 128
      %47 = vsyncadd [#allocation4], %s46
      %s49 = sshll.u32 [#allocation5], 4
      %s50 = int_to_ptr.vmem [resolvable:$true] %s49
      %52 = dma.vmem_to_hbm [thread:$0]  %s50, 128, %s1, [#allocation4]
    $region13: #{softmax_stable.1} parent=1 // pred_fallthru
      _
    // Predicated region
    $region14: #{softmax_stable.1} parent=1 // pred_check
      _
    $region15: #{softmax_stable.1} parent=1 // pred_check_branch
      %54 = sbr.rel (0) target = $region17
    $region16: #{softmax_stable.1} parent=1 // pred_region
      %55 = dma.done [#allocation4], 128
    $region17: #{softmax_stable.1} parent=1 // pred_fallthru
      _
    %56 = vsyncpa [#allocation3], 1
    %57 = vsyncpa [#allocation4], 1

</llo_original>
